<compile_context>
chip_gen: v7x
topology: tpu7x:2x2x1
jax: 0.10.0
libtpu: 0.0.40
codegen_flags: <defaults>
</compile_context>

<pallas_src>
import functools

import jax
import jax.numpy as jnp
from jax.experimental import pallas as pl
from jax.experimental.pallas import tpu as pltpu

LANE = 128


def _round_up(v, m):
    return ((v + m - 1) // m) * m


def ff_gaussian_kernel(x_ref, w_ref, b_ref, o_ref):
    # x_ref: [dim_in,  tb_rows, 128] VMEM  (lane-dense input slab)
    # w_ref: [dim_out*dim_in]        SMEM  (torch Linear.weight, row-major flat)
    # b_ref: [dim_out]               SMEM
    # o_ref: [dim_out, tb_rows, 128] VMEM  (lane-dense output slab)
    dim_in = x_ref.shape[0]
    dim_out = o_ref.shape[0]

    # Hoist the input tile loads out of the dim_out loop: one vld chain per
    # input channel, reused for every output channel.
    xs = [x_ref[k].astype(jnp.float32) for k in range(dim_in)]

    # Tiny static unroll (dim_out=2, dim_in=1 for FFGaussian defaults).
    # Pure VPU (broadcast mul/add from SMEM scalars) + EUP tanh; no MXU.
    for j in range(dim_out):
        acc = xs[0] * w_ref[j * dim_in]
        for k in range(1, dim_in):
            acc = acc + xs[k] * w_ref[j * dim_in + k]
        o_ref[j] = jnp.tanh(acc + b_ref[j]).astype(o_ref.dtype)


def ff_gaussian_pallas(x, weight, bias, *, max_rows_per_step=4096, out_dtype=None):
    """tanh(x @ weight.T + bias) via the Pallas TPU kernel.

    x:      [N, dim_in]        float32
    weight: [dim_out, dim_in]  float32 (torch nn.Linear layout)
    bias:   [dim_out]          float32
    """
    N, dim_in = x.shape
    dim_out, dim_in_w = weight.shape
    assert dim_in_w == dim_in, "weight shape does not match x"
    out_dtype = jnp.dtype(out_dtype) if out_dtype is not None else x.dtype

    # Guard: a row-tile must be a multiple of 8 sublanes (or the full extent).
    max_rows_per_step = max(8, (int(max_rows_per_step) // 8) * 8)

    # Fold the batch dim onto the 128-lane axis; pad only to a multiple of 128
    # (skipped entirely when already aligned). The last row-tile may be ragged.
    rows = pl.cdiv(N, LANE)
    n_pad = rows * LANE
    if n_pad != N:
        x = jnp.pad(x, ((0, n_pad - N), (0, 0)))          # zero tail (tanh-safe, sliced off)
    # For dim_in == 1 this transpose/reshape is metadata-only.
    x_slab = x.T.reshape(dim_in, rows, LANE)

    # Tile selection: big tiles to amortize per-step overhead, but always >= 2
    # "parallel" steps once the problem is big enough so megacore (v7x) shards it.
    if rows < 16:
        tb_rows = rows                                     # single step, block == full dims
    else:
        tb_rows = min(max_rows_per_step, _round_up(pl.cdiv(rows, 2), 8))
    num_steps = pl.cdiv(rows, tb_rows)

    w_flat = weight.reshape(-1).astype(jnp.float32)        # [dim_out*dim_in]
    b_vec = bias.astype(jnp.float32)                       # [dim_out]

    # Scoped-VMEM budget: double-buffered input + output tiles plus headroom.
    in_tile_b = dim_in * tb_rows * LANE * x.dtype.itemsize
    out_tile_b = dim_out * tb_rows * LANE * out_dtype.itemsize
    vmem_limit = int(min(48 << 20, max(16 << 20, 2 * (in_tile_b + out_tile_b) + (8 << 20))))

    cost = pl.CostEstimate(
        flops=2 * n_pad * dim_in * dim_out,
        transcendentals=n_pad * dim_out,
        bytes_accessed=int(n_pad * dim_in * x.dtype.itemsize
                           + n_pad * dim_out * out_dtype.itemsize),
    )

    out_slab = pl.pallas_call(
        ff_gaussian_kernel,
        out_shape=jax.ShapeDtypeStruct((dim_out, rows, LANE), out_dtype),
        grid_spec=pltpu.PrefetchScalarGridSpec(
            num_scalar_prefetch=0,
            grid=(num_steps,),
            in_specs=[
                # lane-dense batch-row tile of the input
                pl.BlockSpec((dim_in, tb_rows, LANE), lambda i: (0, i, 0)),
                # tiny weight / bias live in SMEM as scalars (not streamed VMEM tiles)
                pl.BlockSpec(memory_space=pltpu.MemorySpace.SMEM),
                pl.BlockSpec(memory_space=pltpu.MemorySpace.SMEM),
            ],
            out_specs=pl.BlockSpec((dim_out, tb_rows, LANE), lambda i: (0, i, 0)),
        ),
        compiler_params=pltpu.CompilerParams(
            dimension_semantics=("parallel",),
            vmem_limit_bytes=vmem_limit,
        ),
        cost_estimate=cost,
    )(x_slab, w_flat, b_vec)

    # Wrapper-side layout plumbing back to [N, dim_out] (see TODO at top of file).
    out = jnp.transpose(out_slab, (1, 2, 0)).reshape(n_pad, dim_out)
    return out[:N]


def ff_gaussian(x, weight, bias, *, max_rows_per_step=4096, out_dtype=None,
                min_pallas_batch=1 << 15):
    """FFGaussian.forward. Dispatches to a fused-XLA fast path for small batches
    (pad + pallas_call + transpose launch overhead dwarfs the work there) and to
    the HBM-streaming Pallas kernel for large batches."""
    N = x.shape[0]
    if N < min_pallas_batch:
        out = jnp.tanh(x @ weight.T + bias[None, :])
        return out.astype(out_dtype) if out_dtype is not None else out
    return ff_gaussian_pallas(x, weight, bias,
                              max_rows_per_step=max_rows_per_step,
                              out_dtype=out_dtype)


if __name__ == "__main__":
    key = jax.random.PRNGKey(0)

    # --- Case 1: FFGaussian defaults (dim_in=1, dim_out=2), N not a multiple of
    #     128 -> exercises padding, the multi-step "parallel" grid and the ragged
    #     last row-tile. Small max_rows_per_step so the demo uses >1 grid step.
    dim_in, dim_out = 1, 2
    N = 2500
    kx, kw, kb, key = jax.random.split(key, 4)
    bound = 1.0 / jnp.sqrt(jnp.float32(dim_in))
    W = jax.random.uniform(kw, (dim_out, dim_in), jnp.float32, -bound, bound)
    b = jax.random.uniform(kb, (dim_out,), jnp.float32, -bound, bound)
    x = jax.random.normal(kx, (N, dim_in), jnp.float32)

    out = ff_gaussian_pallas(x, W, b, max_rows_per_step=16)
    out = jax.block_until_ready(out)
    ref = jnp.tanh(x @ W.T + b[None, :])
    assert out.shape == (N, dim_out)
    assert jnp.allclose(out, ref, atol=1e-5, rtol=1e-5), "case 1 mismatch vs reference"

    # Public wrapper (fast path at this size) must agree too.
    out_fast = jax.block_until_ready(ff_gaussian(x, W, b))
    assert jnp.allclose(out_fast, ref, atol=1e-5, rtol=1e-5), "fast-path mismatch"

    # --- Case 2: non-default dims (dim_in=3, dim_out=4), single-step path.
    dim_in2, dim_out2 = 3, 4
    N2 = 300
    kx2, kw2, kb2, key = jax.random.split(key, 4)
    bound2 = 1.0 / jnp.sqrt(jnp.float32(dim_in2))
    W2 = jax.random.uniform(kw2, (dim_out2, dim_in2), jnp.float32, -bound2, bound2)
    b2 = jax.random.uniform(kb2, (dim_out2,), jnp.float32, -bound2, bound2)
    x2 = jax.random.normal(kx2, (N2, dim_in2), jnp.float32)

    out2 = jax.block_until_ready(ff_gaussian_pallas(x2, W2, b2))
    ref2 = jnp.tanh(x2 @ W2.T + b2[None, :])
    assert out2.shape == (N2, dim_out2)
    assert jnp.allclose(out2, ref2, atol=1e-5, rtol=1e-5), "case 2 mismatch vs reference"

    print("KERNEL_OK")
</pallas_src>

<mosaic_0001>
module attributes {stable_mosaic.version = 11 : i64} {
  func.func @ff_gaussian_kernel(%arg0: i32, %arg1: memref<1x16x128xf32, #tpu.memory_space<vmem>>, %arg2: memref<2xf32, #tpu.memory_space<smem>>, %arg3: memref<2xf32, #tpu.memory_space<smem>>, %arg4: memref<2x16x128xf32, #tpu.memory_space<vmem>>) attributes {dimension_semantics = [#tpu.dimension_semantics<parallel>], iteration_bounds = array<i64: 2>, scalar_prefetch = 0 : i64, scratch_operands = 0 : i64, tpu.core_type = #tpu.core_type<tc>, window_params = [{transform_indices = @transform_0, window_bounds = array<i64: 1, 16, 128>}, {transform_indices = @transform_1, window_bounds = array<i64: 2>}, {transform_indices = @transform_2, window_bounds = array<i64: 2>}, {transform_indices = @transform_3, window_bounds = array<i64: 2, 16, 128>}]} {
    %c0 = arith.constant 0 : index
    %c0_0 = arith.constant 0 : index
    %c0_1 = arith.constant 0 : index
    %0 = vector.load %arg1[%c0, %c0_0, %c0_1] : memref<1x16x128xf32, #tpu.memory_space<vmem>>, vector<1x16x128xf32>
    %1 = vector.shape_cast %0 : vector<1x16x128xf32> to vector<16x128xf32>
    %c0_2 = arith.constant 0 : index
    %2 = memref.load %arg2[%c0_2] : memref<2xf32, #tpu.memory_space<smem>>
    %3 = vector.broadcast %2 : f32 to vector<16x128xf32>
    %4 = arith.mulf %1, %3 : vector<16x128xf32>
    %c0_3 = arith.constant 0 : index
    %5 = memref.load %arg3[%c0_3] : memref<2xf32, #tpu.memory_space<smem>>
    %6 = vector.broadcast %5 : f32 to vector<16x128xf32>
    %7 = arith.addf %4, %6 : vector<16x128xf32>
    %8 = math.tanh %7 : vector<16x128xf32>
    %c0_4 = arith.constant 0 : index
    %c0_5 = arith.constant 0 : index
    %c0_6 = arith.constant 0 : index
    %9 = vector.load %arg4[%c0_4, %c0_5, %c0_6] : memref<2x16x128xf32, #tpu.memory_space<vmem>>, vector<1x16x128xf32>
    %10 = vector.shape_cast %9 : vector<1x16x128xf32> to vector<16x128xf32>
    %11 = vector.shape_cast %8 : vector<16x128xf32> to vector<1x16x128xf32>
    tpu.vector_store %arg4[%c0_4, %c0_5, %c0_6], %11 {strides = array<i32>} : memref<2x16x128xf32, #tpu.memory_space<vmem>>, vector<1x16x128xf32>,
    %c1 = arith.constant 1 : index
    %12 = memref.load %arg2[%c1] : memref<2xf32, #tpu.memory_space<smem>>
    %13 = vector.broadcast %12 : f32 to vector<16x128xf32>
    %14 = arith.mulf %1, %13 : vector<16x128xf32>
    %c1_7 = arith.constant 1 : index
    %15 = memref.load %arg3[%c1_7] : memref<2xf32, #tpu.memory_space<smem>>
    %16 = vector.broadcast %15 : f32 to vector<16x128xf32>
    %17 = arith.addf %14, %16 : vector<16x128xf32>
    %18 = math.tanh %17 : vector<16x128xf32>
    %c1_8 = arith.constant 1 : index
    %c0_9 = arith.constant 0 : index
    %c0_10 = arith.constant 0 : index
    %19 = vector.load %arg4[%c1_8, %c0_9, %c0_10] : memref<2x16x128xf32, #tpu.memory_space<vmem>>, vector<1x16x128xf32>
    %20 = vector.shape_cast %19 : vector<1x16x128xf32> to vector<16x128xf32>
    %21 = vector.shape_cast %18 : vector<16x128xf32> to vector<1x16x128xf32>
    tpu.vector_store %arg4[%c1_8, %c0_9, %c0_10], %21 {strides = array<i32>} : memref<2x16x128xf32, #tpu.memory_space<vmem>>, vector<1x16x128xf32>,
    return
  }
  func.func @transform_0(%arg0: i32) -> (i32, i32, i32) {
    %c0_i32 = arith.constant 0 : i32
    %c0_i32_0 = arith.constant 0 : i32
    %c0_i32_1 = arith.constant 0 : i32
    return %c0_i32, %arg0, %c0_i32_0 : i32, i32, i32
  }
  func.func @transform_1(%arg0: i32) -> i32 {
    %c0_i32 = arith.constant 0 : i32
    %c0_i32_0 = arith.constant 0 : i32
    return %c0_i32 : i32
  }
  func.func @transform_2(%arg0: i32) -> i32 {
    %c0_i32 = arith.constant 0 : i32
    %c0_i32_0 = arith.constant 0 : i32
    return %c0_i32 : i32
  }
  func.func @transform_3(%arg0: i32) -> (i32, i32, i32) {
    %c0_i32 = arith.constant 0 : i32
    %c0_i32_0 = arith.constant 0 : i32
    %c0_i32_1 = arith.constant 0 : i32
    return %c0_i32, %arg0, %c0_i32_0 : i32, i32, i32
  }
}

</mosaic_0001>

<llo_original>
// kernel: tpu_custom_call.1
$region0: #{tpu_custom_call.1}
  #allocation0 [shape = 'u32[]', space=smem, size = 0x4, offset = 0x4, fixed_abs, tag = 'smem constant byte address 0x4 - core index']
  #allocation1 [shape = 'u32[144,128]{1,0:T(1,128)}', space=vmem, size = 0x12000, scoped, tag = 'internal scratch']
  %s0 = inlined_call_operand.vmem [shape: f32[1,20,128], index: 0, kind: input, shape index: {}]
  %s1 = inlined_call_operand.vmem [shape: f32[2], index: 1, kind: input, shape index: {}]
  %s2 = inlined_call_operand.vmem [shape: f32[2], index: 2, kind: input, shape index: {}]
  %s3 = inlined_call_operand.vmem [shape: f32[2,20,128], index: 3, kind: output, shape index: {}]
  %s4 = sld [smem:[#allocation0]]
  $region101: #{tpu_custom_call.1} parent=0
    _
  %s6 = ssub.s32 1, %s4
  %s7 = scalar_select 0, %s6, %s4
  $region1: #{tpu_custom_call.1} parent=0
    #allocation2 [shape = 'u8[512]{0}', space=smem, size = 0x200, scoped, tag = 'input window, operand 1, single buffered']
    #allocation3 [shape = 's32[2]{0}', space=sflag, size = 0x8, scoped, tag = 'scoped memory for tpu_custom_call.1']
    #allocation4 [shape = 'u8[512]{0}', space=smem, size = 0x200, scoped, tag = 'input window, operand 2, single buffered']
    #allocation5 [shape = 's32[1]{0}', space=sflag, size = 0x4, scoped, tag = 'scoped memory for tpu_custom_call.1']
    #allocation6 [shape = 'u8[32768]{0}', space=vmem, size = 0x8000, scoped, tag = 'output window, operand 0']
    %8 = vsyncpa [#allocation3], 0
    %9 = vsyncpa [#allocation5], 0
    loop: start=0, step=1, limit=4
    $region2: #{tpu_custom_call.1} parent=1 // loop_pre_header
      _
    $region3: #{tpu_custom_call.1} parent=1 // loop_header
      %s11 = sphi 0, %s15
      %p12 = scmp.ge.s32.totalorder %s11, 4
      %s21 = sphi 0, %s23
      %s24 = sphi 0, %s21
      %s25 = sphi 0, %s24
      %s41 = sphi 0, %s25
      %s45 = sphi 0, %s45
      %s47 = sphi 0, %s45
      %s48 = sphi 0, %s47
      %s62 = sphi 0, %s48
      %s66 = sphi 0, %s66
      %s68 = sphi 0, %s66
      %s69 = sphi 0, %s68
      %s83 = sphi 0, %s69
      %s89 = sphi 0, %s91
      %s92 = sphi 0, %s89
      %s93 = sphi 0, %s92
      %s109 = sphi 0, %s93
    $region4: #{tpu_custom_call.1} parent=1 // loop_header_branch
      %14 = sbr.rel (%p12) target = $region8
    $region5: #{tpu_custom_call.1} parent=1 // loop_body
      %s16 = ssub.s32 %s11, 1
      %s17 = ssub.s32 %s11, 2
      %s18 = sadd.s32 %s11, 1
      %s19 = ssub.s32 %s11, %s18
      %p20 = scmp.eq.s32.totalorder %s19, 0
      %s22 = sadd.s32 %s21, 1
      %s23 = scalar_select %p20, %s21, %s22
      %p26 = pneg %p20
      %p27 = scmp.eq.s32.totalorder %s11, 1
      %p28 = por %p26, %p27
      %p29 = scmp.ne.s32.totalorder %s21, %s24
      %p30 = scmp.eq.s32.totalorder %s11, 0
      %p31 = por %p29, %p30
      %p32 = scmp.ne.s32.totalorder %s21, %s24
      %p33 = scmp.eq.s32.totalorder %s16, 1
      %p34 = por %p32, %p33
      %p35 = scmp.ne.s32.totalorder %s24, %s25
      %p36 = scmp.eq.s32.totalorder %s16, 0
      %p37 = por %p35, %p36
      %p38 = scmp.ne.s32.totalorder %s24, %s25
      %p39 = scmp.eq.s32.totalorder %s17, 1
      %p40 = por %p38, %p39
      %p42 = scmp.ne.s32.totalorder %s25, %s41
      %p43 = scmp.eq.s32.totalorder %s17, 0
      %p44 = por %p42, %p43
      %s46 = sadd.s32 %s45, 1
      %p49 = scmp.eq.s32.totalorder %s11, 1
      %p50 = scmp.ne.s32.totalorder %s45, %s47
      %p51 = scmp.eq.s32.totalorder %s11, 0
      %p52 = por %p50, %p51
      %p53 = scmp.ne.s32.totalorder %s45, %s47
      %p54 = scmp.eq.s32.totalorder %s16, 1
      %p55 = por %p53, %p54
      %p56 = scmp.ne.s32.totalorder %s47, %s48
      %p57 = scmp.eq.s32.totalorder %s16, 0
      %p58 = por %p56, %p57
      %p59 = scmp.ne.s32.totalorder %s47, %s48
      %p60 = scmp.eq.s32.totalorder %s17, 1
      %p61 = por %p59, %p60
      %p63 = scmp.ne.s32.totalorder %s48, %s62
      %p64 = scmp.eq.s32.totalorder %s17, 0
      %p65 = por %p63, %p64
      %s67 = sadd.s32 %s66, 1
      %p70 = scmp.eq.s32.totalorder %s11, 1
      %p71 = scmp.ne.s32.totalorder %s66, %s68
      %p72 = scmp.eq.s32.totalorder %s11, 0
      %p73 = por %p71, %p72
      %p74 = scmp.ne.s32.totalorder %s66, %s68
      %p75 = scmp.eq.s32.totalorder %s16, 1
      %p76 = por %p74, %p75
      %p77 = scmp.ne.s32.totalorder %s68, %s69
      %p78 = scmp.eq.s32.totalorder %s16, 0
      %p79 = por %p77, %p78
      %p80 = scmp.ne.s32.totalorder %s68, %s69
      %p81 = scmp.eq.s32.totalorder %s17, 1
      %p82 = por %p80, %p81
      %p84 = scmp.ne.s32.totalorder %s69, %s83
      %p85 = scmp.eq.s32.totalorder %s17, 0
      %p86 = por %p84, %p85
      %s87 = ssub.s32 %s11, %s18
      %p88 = scmp.eq.s32.totalorder %s87, 0
      %s90 = sadd.s32 %s89, 1
      %s91 = scalar_select %p88, %s89, %s90
      %p94 = pneg %p88
      %p95 = scmp.eq.s32.totalorder %s11, 1
      %p96 = por %p94, %p95
      %p97 = scmp.ne.s32.totalorder %s89, %s92
      %p98 = scmp.eq.s32.totalorder %s11, 0
      %p99 = por %p97, %p98
      %p100 = scmp.ne.s32.totalorder %s89, %s92
      %p101 = scmp.eq.s32.totalorder %s16, 1
      %p102 = por %p100, %p101
      %p103 = scmp.ne.s32.totalorder %s92, %s93
      %p104 = scmp.eq.s32.totalorder %s16, 0
      %p105 = por %p103, %p104
      %p106 = scmp.ne.s32.totalorder %s92, %s93
      %p107 = scmp.eq.s32.totalorder %s17, 1
      %p108 = por %p106, %p107
      %p110 = scmp.ne.s32.totalorder %s93, %s109
      %p111 = scmp.eq.s32.totalorder %s17, 0
      %p112 = por %p110, %p111
      %p113 = scmp.le.s32.totalorder 1, %s11
      %p114 = scmp.lt.s32.totalorder %s11, 3
      %p115 = pnand %p113, %p114
      %p116 = pneg %p115
      // Predicated region
      $region9: #{tpu_custom_call.1} parent=5 // pred_check
        _
      $region10: #{tpu_custom_call.1} parent=5 // pred_check_branch
        %118 = sbr.rel (%p115) target = $region12
      $region11: #{tpu_custom_call.1} parent=5 // pred_region
        %s119 = ssub.s32 %s11, 1
        // Predicated region
        $region13: #{tpu_custom_call.1} parent=11 // pred_check
          %p120 = pneg %p58
        $region14: #{tpu_custom_call.1} parent=11 // pred_check_branch
          %122 = sbr.rel (%p120) target = $region16
        $region15: #{tpu_custom_call.1} parent=11 // pred_region
          %s124 = ssub.s32 16, 16
          %125 = vsyncadd [#allocation3], %s124
          %s127 = sshll.u32 %s1, 4
          %s128 = int_to_ptr.vmem [resolvable:$true] %s127
          %130 = dma.vmem_to_smem %s128, 16, [#allocation2], [#allocation3]
        $region16: #{tpu_custom_call.1} parent=11 // pred_fallthru
          _
        // Predicated region
        $region17: #{tpu_custom_call.1} parent=11 // pred_check
          %p131 = pneg %p79
        $region18: #{tpu_custom_call.1} parent=11 // pred_check_branch
          %133 = sbr.rel (%p131) target = $region20
        $region19: #{tpu_custom_call.1} parent=11 // pred_region
          %s135 = ssub.s32 16, 16
          %136 = vsyncadd [#allocation5], %s135
          %s138 = sshll.u32 %s2, 4
          %s139 = int_to_ptr.vmem [resolvable:$true] %s138
          %141 = dma.vmem_to_smem %s139, 16, [#allocation4], [#allocation5]
        $region20: #{tpu_custom_call.1} parent=11 // pred_fallthru
          _
      $region12: #{tpu_custom_call.1} parent=5 // pred_fallthru
        _
      %p142 = scmp.lt.s32.totalorder %s11, 2
      // Predicated region
      $region21: #{tpu_custom_call.1} parent=5 // pred_check
        %p143 = pneg %p142
      $region22: #{tpu_custom_call.1} parent=5 // pred_check_branch
        %145 = sbr.rel (%p143) target = $region24
      $region23: #{tpu_custom_call.1} parent=5 // pred_region
        // Predicated region
        $region25: #{tpu_custom_call.1} parent=23 // pred_check
          %p146 = pneg %p31
        $region26: #{tpu_custom_call.1} parent=23 // pred_check_branch
          %148 = sbr.rel (%p146) target = $region28
        $region27: #{tpu_custom_call.1} parent=23 // pred_region
          %s149 = smul.u32 2, %s11
          %s150 = ssub.s32 3, %s149
          %p151 = scmp.lt.s32.totalorder %s150, 2
          %s152 = scalar_select %p151, %s150, 2
          %s153 = smul.u32 128, %s152
          %p154 = scmp.lt.s32.totalorder %s149, 2
          %s155 = scalar_select %p154, %s149, 2
          %s156 = smul.addr %s155, 8
          %s157 = scalar_lea.vmem %s0, %s156
          %s158 = smul.u32 2, %s11
          %s159 = ssub.s32 3, %s158
          %p160 = scmp.lt.s32.totalorder %s159, 2
          %s161 = scalar_select %p160, %s159, 2
          %s162 = smul.u32 128, %s161
        $region28: #{tpu_custom_call.1} parent=23 // pred_fallthru
          _
      $region24: #{tpu_custom_call.1} parent=5 // pred_fallthru
        _
      %p163 = scmp.le.s32.totalorder 1, %s11
      %p164 = scmp.lt.s32.totalorder %s11, 3
      %p165 = pnand %p163, %p164
      %p166 = pneg %p165
      // Predicated region
      $region29: #{tpu_custom_call.1} parent=5 // pred_check
        _
      $region30: #{tpu_custom_call.1} parent=5 // pred_check_branch
        %168 = sbr.rel (%p165) target = $region32
      $region31: #{tpu_custom_call.1} parent=5 // pred_region
        %s169 = ssub.s32 %s11, 1
        // Predicated region
        $region33: #{tpu_custom_call.1} parent=31 // pred_check
          %p170 = pneg %p58
        $region34: #{tpu_custom_call.1} parent=31 // pred_check_branch
          %172 = sbr.rel (%p170) target = $region36
        $region35: #{tpu_custom_call.1} parent=31 // pred_region
          %173 = dma.done [#allocation3], 16
        $region36: #{tpu_custom_call.1} parent=31 // pred_fallthru
          _
        // Predicated region
        $region37: #{tpu_custom_call.1} parent=31 // pred_check
          %p174 = pneg %p79
        $region38: #{tpu_custom_call.1} parent=31 // pred_check_branch
          %176 = sbr.rel (%p174) target = $region40
        $region39: #{tpu_custom_call.1} parent=31 // pred_region
          %177 = dma.done [#allocation5], 16
        $region40: #{tpu_custom_call.1} parent=31 // pred_fallthru
          _
        %178 = sfence
        %s179 = smul.u32 2, %s16
        %s180 = ssub.s32 3, %s179
        %p181 = scmp.lt.s32.totalorder %s180, 2
        %s182 = scalar_select %p181, %s180, 2
        %s183 = smul.u32 128, %s182
        %p184 = scmp.lt.s32.totalorder %s179, 2
        %s185 = scalar_select %p184, %s179, 2
        %s186 = smul.addr %s185, 8
        %s187 = scalar_lea.vmem %s0, %s186
        %p188 = pneg %p37
        %p189 = pneg %p34
        %p190 = pneg %p58
        %p191 = pneg %p55
        %p192 = pneg %p79
        %p193 = pneg %p76
        %p194 = pneg %p105
        %p195 = pneg %p102
        %s196 = sand.u32 %s92, 1
        %s197 = sand.u32 %s92, 1
        %s198 = smul.addr %s197, 32
        %s199 = scalar_lea.vmem [#allocation6], %s198
        %s200 = smul.u32 2, %s16
        %s201 = ssub.s32 3, %s200
        %p202 = scmp.lt.s32.totalorder %s201, 2
        %s203 = scalar_select %p202, %s201, 2
        %s204 = smul.u32 128, %s203
        %p205 = scmp.lt.s32.totalorder %s200, 2
        %s206 = scalar_select %p205, %s200, 2
        %s207 = smul.addr %s206, 8
        %s208 = scalar_lea.vmem %s0, %s207
        %s209 = smul.u32 2, %s16
        %s210 = ssub.s32 3, %s209
        %p211 = scmp.lt.s32.totalorder %s210, 2
        %s212 = scalar_select %p211, %s210, 2
        %s213 = smul.u32 128, %s212
        %s214 = smul.u32 2, %s16
        %s215 = ssub.s32 3, %s214
        %p216 = scmp.lt.s32.totalorder %s215, 2
        %s217 = scalar_select %p216, %s215, 2
        %s218 = smul.u32 256, %s217
        %v219 = vld [vmem:[%s208] sm:$0xff]
        %v220 = vld [vmem:[%s208 + $0x8] sm:$0xff]
        %s221 = sld [smem:[#allocation2]]
        %v222 = vstv %s221
        %v223 = vmul.f32 %v219, %v222
        %v224 = vmul.f32 %v220, %v222
        %s225 = sld [smem:[#allocation4]]
        %v226 = vstv %s225
        %v227 = vadd.f32 %v223, %v226
        %v228 = vadd.f32 %v224, %v226
        %v229 = vtanh.pop %v227
        %v230 = vtanh.pop %v228
        %231 = vst [vmem:[%s199] sm:$0xff] %v229
        %232 = vst [vmem:[%s199 + $0x8] sm:$0xff] %v230
        %s233 = sld [smem:[#allocation2 + $0x1]]
        %v234 = vstv %s233
        %v235 = vmul.f32 %v219, %v234
        %v236 = vmul.f32 %v220, %v234
        %s237 = sld [smem:[#allocation4 + $0x1]]
        %v238 = vstv %s237
        %v239 = vadd.f32 %v235, %v238
        %v240 = vadd.f32 %v236, %v238
        %v241 = vtanh.pop %v239
        %v242 = vtanh.pop %v240
        %s243 = scalar_lea.vmem %s199, 16 [#allocation6]
        %244 = vst [vmem:[%s243] sm:$0xff] %v241
        %245 = vst [vmem:[%s243 + $0x8] sm:$0xff] %v242
        %s246 = sand.u32 %s92, 1
        %s247 = sand.u32 %s92, 1
        %s248 = smul.addr %s247, 32
        %s249 = scalar_lea.vmem [#allocation6], %s248
        // Predicated region
        $region41: #{tpu_custom_call.1} parent=31 // pred_check
          %p250 = pneg %p102
        $region42: #{tpu_custom_call.1} parent=31 // pred_check_branch
          %252 = sbr.rel (%p250) target = $region44
        $region43: #{tpu_custom_call.1} parent=31 // pred_region
          %s253 = smul.u32 2, %s16
          %s254 = ssub.s32 3, %s253
          %p255 = scmp.lt.s32.totalorder %s254, 2
          %s256 = scalar_select %p255, %s254, 2
          %s257 = smul.u32 256, %s256
          %p258 = scmp.ne.s32.totalorder 0, %s257
          %s259 = smul.addr %s253, 8
          %s260 = scalar_lea.vmem %s3, %s259
          // Predicated region
          $region45: #{tpu_custom_call.1} parent=43 // pred_check
            %p261 = pneg %p258
          $region46: #{tpu_custom_call.1} parent=43 // pred_check_branch
            %263 = sbr.rel (%p261) target = $region48
          $region47: #{tpu_custom_call.1} parent=43 // pred_region
            // Predicated region
            $region49: #{tpu_custom_call.1} parent=47 // pred_check
              _
            $region50: #{tpu_custom_call.1} parent=47 // pred_check_branch
              %265 = sbr.rel (0) target = $region52
            $region51: #{tpu_custom_call.1} parent=47 // pred_region
              // Predicated region
              $region71: #{tpu_custom_call.1} parent=51 // pred_check
                _
              $region72: #{tpu_custom_call.1} parent=51 // pred_check_branch
                %322 = sbr.rel (0) target = $region74
              $region73: #{tpu_custom_call.1} parent=51 // pred_region
                %s323 = sshrl.u32 %s256, 1
                // While loop
                $region75: #{tpu_custom_call.1} parent=73 // loop_pre_header
                  _
                $region76: #{tpu_custom_call.1} parent=73 // loop_header
                  %s325 = sphi 0, %s327
                  %p326 = scmp.ge.s32.totalorder %s325, %s323
                  %s330 = sphi 0, %s343
                  %s331 = sphi %s249, %s346
                  %s332 = sphi %s260, %s347
                $region77: #{tpu_custom_call.1} parent=73 // loop_header_branch
                  %329 = sbr.rel (%p326) target = $region81
                $region78: #{tpu_custom_call.1} parent=73 // loop_body
                  %v333 = vld [vmem:[%s331] sm:$0xff]
                  %334 = vst [vmem:[%s332] sm:$0xff] %v333
                  %v335 = vld [vmem:[%s331 + $0x8] sm:$0xff]
                  %336 = vst [vmem:[%s332 + $0x8] sm:$0xff] %v335
                  %v337 = vld [vmem:[%s331 + $0x10] sm:$0xff]
                  %338 = vst [vmem:[%s332 + $0x18] sm:$0xff] %v337
                  %v339 = vld [vmem:[%s331 + $0x18] sm:$0xff]
                  %340 = vst [vmem:[%s332 + $0x20] sm:$0xff] %v339
                  %s341 = sadd.s32 1, %s330
                  %p342 = scmp.ge.s32.totalorder %s341, %s323
                  %s343 = scalar_select %p342, 0, %s341
                  %s344 = smul.u32 %s343, 16
                  %s345 = smul.u32 %s343, 16
                  %s346 = scalar_lea.vmem %s249, %s344 [#allocation6]
                  %s347 = scalar_lea.vmem %s260, %s345
                $region79: #{tpu_custom_call.1} parent=73 // loop_footer
                  %s327 = sadd.s32 %s325, 1
                $region80: #{tpu_custom_call.1} parent=73 // loop_footer_branch
                  %324 = sbr.rel target = $region76
                $region81: #{tpu_custom_call.1} parent=73 // loop_exit
                  _
                %s348 = sshrl.u32 %s256, 1
                %s349 = sand.u32 %s256, 1
                %s350 = smul.u32 %s348, 2
                %s351 = smul.u32 8, %s350
                %s352 = scalar_lea.vmem %s249, %s351 [#allocation6]
                %s353 = smul.u32 8, %s350
                %s354 = scalar_lea.vmem %s260, %s353
                // While loop
                $region82: #{tpu_custom_call.1} parent=73 // loop_pre_header
                  _
                $region83: #{tpu_custom_call.1} parent=73 // loop_header
                  %s356 = sphi 0, %s358
                  %p357 = scmp.ge.s32.totalorder %s356, %s349
                  %s361 = sphi 0, %s370
                  %s362 = sphi %s352, %s373
                  %s363 = sphi %s354, %s374
                $region84: #{tpu_custom_call.1} parent=73 // loop_header_branch
                  %360 = sbr.rel (%p357) target = $region88
                $region85: #{tpu_custom_call.1} parent=73 // loop_body
                  %v364 = vld [vmem:[%s362] sm:$0xff]
                  %365 = vst [vmem:[%s363] sm:$0xff] %v364
                  %v366 = vld [vmem:[%s362 + $0x10] sm:$0xff]
                  %367 = vst [vmem:[%s363 + $0x18] sm:$0xff] %v366
                  %s368 = sadd.s32 1, %s361
                  %p369 = scmp.ge.s32.totalorder %s368, %s349
                  %s370 = scalar_select %p369, 0, %s368
                  %s371 = smul.u32 %s370, 8
                  %s372 = smul.u32 %s370, 8
                  %s373 = scalar_lea.vmem %s352, %s371 [#allocation6]
                  %s374 = scalar_lea.vmem %s354, %s372
                $region86: #{tpu_custom_call.1} parent=73 // loop_footer
                  %s358 = sadd.s32 %s356, 1
                $region87: #{tpu_custom_call.1} parent=73 // loop_footer_branch
                  %355 = sbr.rel target = $region83
                $region88: #{tpu_custom_call.1} parent=73 // loop_exit
                  _
              $region74: #{tpu_custom_call.1} parent=51 // pred_fallthru
                _
              // Predicated region
              $region89: #{tpu_custom_call.1} parent=51 // pred_check
                _
              $region90: #{tpu_custom_call.1} parent=51 // pred_check_branch
                %376 = sbr.rel target = $region92
              $region91: #{tpu_custom_call.1} parent=51 // pred_region
                _
              $region92: #{tpu_custom_call.1} parent=51 // pred_fallthru
                _
            $region52: #{tpu_custom_call.1} parent=47 // pred_fallthru
              _
            // Predicated region
            $region53: #{tpu_custom_call.1} parent=47 // pred_check
              _
            $region54: #{tpu_custom_call.1} parent=47 // pred_check_branch
              %267 = sbr.rel target = $region56
            $region55: #{tpu_custom_call.1} parent=47 // pred_region
              %s269 = sshrl.u32 %s256, 1
              // While loop
              $region57: #{tpu_custom_call.1} parent=55 // loop_pre_header
                _
              $region58: #{tpu_custom_call.1} parent=55 // loop_header
                %s271 = sphi 0, %s273
                %p272 = scmp.ge.s32.totalorder %s271, %s269
                %s276 = sphi 0, %s289
                %s277 = sphi %s249, %s292
                %s278 = sphi %s260, %s293
              $region59: #{tpu_custom_call.1} parent=55 // loop_header_branch
                %275 = sbr.rel (%p272) target = $region63
              $region60: #{tpu_custom_call.1} parent=55 // loop_body
                %v279 = vld [vmem:[%s277] sm:$0xff]
                %280 = vst [vmem:[%s278] sm:$0xff] %v279
                %v281 = vld [vmem:[%s277 + $0x8] sm:$0xff]
                %282 = vst [vmem:[%s278 + $0x8] sm:$0xff] %v281
                %v283 = vld [vmem:[%s277 + $0x10] sm:$0xff]
                %284 = vst [vmem:[%s278 + $0x18] sm:$0xff] %v283
                %v285 = vld [vmem:[%s277 + $0x18] sm:$0xff]
                %286 = vst [vmem:[%s278 + $0x20] sm:$0xff] %v285
                %s287 = sadd.s32 1, %s276
                %p288 = scmp.ge.s32.totalorder %s287, %s269
                %s289 = scalar_select %p288, 0, %s287
                %s290 = smul.u32 %s289, 16
                %s291 = smul.u32 %s289, 16
                %s292 = scalar_lea.vmem %s249, %s290 [#allocation6]
                %s293 = scalar_lea.vmem %s260, %s291
              $region61: #{tpu_custom_call.1} parent=55 // loop_footer
                %s273 = sadd.s32 %s271, 1
              $region62: #{tpu_custom_call.1} parent=55 // loop_footer_branch
                %270 = sbr.rel target = $region58
              $region63: #{tpu_custom_call.1} parent=55 // loop_exit
                _
              %s294 = sshrl.u32 %s256, 1
              %s295 = sand.u32 %s256, 1
              %s296 = smul.u32 %s294, 2
              %s297 = smul.u32 8, %s296
              %s298 = scalar_lea.vmem %s249, %s297 [#allocation6]
              %s299 = smul.u32 8, %s296
              %s300 = scalar_lea.vmem %s260, %s299
              // While loop
              $region64: #{tpu_custom_call.1} parent=55 // loop_pre_header
                _
              $region65: #{tpu_custom_call.1} parent=55 // loop_header
                %s302 = sphi 0, %s304
                %p303 = scmp.ge.s32.totalorder %s302, %s295
                %s307 = sphi 0, %s316
                %s308 = sphi %s298, %s319
                %s309 = sphi %s300, %s320
              $region66: #{tpu_custom_call.1} parent=55 // loop_header_branch
                %306 = sbr.rel (%p303) target = $region70
              $region67: #{tpu_custom_call.1} parent=55 // loop_body
                %v310 = vld [vmem:[%s308] sm:$0xff]
                %311 = vst [vmem:[%s309] sm:$0xff] %v310
                %v312 = vld [vmem:[%s308 + $0x10] sm:$0xff]
                %313 = vst [vmem:[%s309 + $0x18] sm:$0xff] %v312
                %s314 = sadd.s32 1, %s307
                %p315 = scmp.ge.s32.totalorder %s314, %s295
                %s316 = scalar_select %p315, 0, %s314
                %s317 = smul.u32 %s316, 8
                %s318 = smul.u32 %s316, 8
                %s319 = scalar_lea.vmem %s298, %s317 [#allocation6]
                %s320 = scalar_lea.vmem %s300, %s318
              $region68: #{tpu_custom_call.1} parent=55 // loop_footer
                %s304 = sadd.s32 %s302, 1
              $region69: #{tpu_custom_call.1} parent=55 // loop_footer_branch
                %301 = sbr.rel target = $region65
              $region70: #{tpu_custom_call.1} parent=55 // loop_exit
                _
            $region56: #{tpu_custom_call.1} parent=47 // pred_fallthru
              _
          $region48: #{tpu_custom_call.1} parent=43 // pred_fallthru
            _
          %377 = vnop
        $region44: #{tpu_custom_call.1} parent=31 // pred_fallthru
          _
      $region32: #{tpu_custom_call.1} parent=5 // pred_fallthru
        _
      %p378 = scmp.le.s32.totalorder 2, %s11
      // Predicated region
      $region93: #{tpu_custom_call.1} parent=5 // pred_check
        %p379 = pneg %p378
      $region94: #{tpu_custom_call.1} parent=5 // pred_check_branch
        %381 = sbr.rel (%p379) target = $region96
      $region95: #{tpu_custom_call.1} parent=5 // pred_region
        %s382 = ssub.s32 %s11, 2
        // Predicated region
        $region97: #{tpu_custom_call.1} parent=95 // pred_check
          %p383 = pneg %p108
        $region98: #{tpu_custom_call.1} parent=95 // pred_check_branch
          %385 = sbr.rel (%p383) target = $region100
        $region99: #{tpu_custom_call.1} parent=95 // pred_region
          %s386 = sand.u32 %s93, 1
          %s387 = sand.u32 %s93, 1
          %s388 = smul.addr %s387, 32
          %s389 = scalar_lea.vmem [#allocation6], %s388
        $region100: #{tpu_custom_call.1} parent=95 // pred_fallthru
          _
      $region96: #{tpu_custom_call.1} parent=5 // pred_fallthru
        _
    $region6: #{tpu_custom_call.1} parent=1 // loop_footer
      %s15 = sadd.s32 1, %s11
    $region7: #{tpu_custom_call.1} parent=1 // loop_footer_branch
      %10 = sbr.rel target = $region3
    $region8: #{tpu_custom_call.1} parent=1 // loop_exit
      _
    %390 = vsyncpa [#allocation3], 1
    %s391 = scalar_lea.sflag [#allocation3], 1
    %392 = vsyncpa %s391, 1
    %393 = vsyncpa [#allocation5], 1

</llo_original>
